<compile_context>
chip_gen: v6e
topology: v6e:2x2x1
jax: 0.10.0
libtpu: 0.0.40
codegen_flags: <defaults>
</compile_context>

<pallas_src>
import jax
import jax.numpy as jnp
from jax import lax
from jax.experimental import pallas as pl
from jax.experimental.pallas import tpu as pltpu


def _cdiv(a, b):
    return (a + b - 1) // b


def _round_up(x, m):
    return _cdiv(x, m) * m


# ----------------------------------------------------------------------------
# Pallas kernels: fused (patches @ weights) + bias [+ PReLU], bf16 output
# ----------------------------------------------------------------------------
def _matmul_bias_prelu_kernel(a_ref, w_ref, b_ref, alpha_ref, o_ref):
    acc = jnp.dot(a_ref[...], w_ref[...], preferred_element_type=jnp.float32)
    acc = acc + b_ref[...]                       # (1, Cp) broadcast over rows
    alpha = alpha_ref[...]                       # (1, Cp) per-channel PReLU slope
    acc = jnp.where(acc >= 0.0, acc, acc * alpha)
    o_ref[...] = acc.astype(o_ref.dtype)         # bf16 store (half write bytes)


def _matmul_bias_kernel(a_ref, w_ref, b_ref, o_ref):
    acc = jnp.dot(a_ref[...], w_ref[...], preferred_element_type=jnp.float32)
    acc = acc + b_ref[...]
    o_ref[...] = acc.astype(o_ref.dtype)


def _pick_tile_m(rows, k_packed, cp, out_itemsize):
    """Row-tile size: multiple of 16 (bf16 sublane packing); aim for >= 8 grid
    steps when rows allow (2 TCs x pipeline depth on v7x); keep per-step VMEM
    (double-buffered A + out, resident W) under ~20 MB."""
    rows16 = _round_up(max(rows, 1), 16)
    if rows16 <= 256:
        tile = rows16
    else:
        tile = max(256, min(1024, _round_up(_cdiv(rows16, 8), 16)))

    def step_bytes(t):
        return (2 * t * k_packed * 2            # A tiles, double-buffered, bf16
                + 2 * t * cp * out_itemsize     # out tiles, double-buffered
                + k_packed * cp * 2)            # resident block-diagonal weight

    while tile > 16 and step_bytes(tile) > 20 * 1024 * 1024:
        tile = _round_up(tile // 2, 16)
    return tile


def fused_matmul_bias_act(a, w, b, alpha=None, out_dtype=jnp.bfloat16):
    """a: (M, K), w: (K, Cout), b: (Cout,), alpha: (Cout,) or None (no act).

    Returns (M, Cout) in `out_dtype`.  The matmul runs in bf16 on the MXU with
    f32 accumulation; the bias / PReLU epilogue stays f32; the store is bf16.
    G = 128 // Cout output pixels are packed per matmul row (block-diagonal
    weight), so stores are lane-dense without padding channels to 128.
    """
    M, K = a.shape
    Cout = w.shape[1]
    apply_prelu = alpha is not None
    out_itemsize = jnp.dtype(out_dtype).itemsize

    G = max(1, 128 // Cout)                      # output pixels packed per row
    Cg = G * Cout                                # useful lanes
    Cp = _round_up(Cg, 128)                      # 128 unless Cout doesn't divide 128
    Kg = G * K

    rows = _cdiv(M, G)
    TILE_M = _pick_tile_m(rows, Kg, Cp, out_itemsize)
    Rp = _round_up(rows, TILE_M)
    grid_m = Rp // TILE_M
    Mpad = Rp * G

    lhs = a.astype(jnp.bfloat16)
    if Mpad != M:
        lhs = jnp.pad(lhs, ((0, Mpad - M), (0, 0)))
    lhs = lhs.reshape(Rp, Kg)                    # pack G pixels/row (free reshape)

    # Block-diagonal weight: out[r, g*Cout + c] = sum_k a[r, g*K + k] * w[k, c].
    w_bf = w.astype(jnp.bfloat16)
    eye = jnp.eye(G, dtype=jnp.bfloat16)
    w_p = (eye[:, None, :, None] * w_bf[None, :, None, :]).reshape(Kg, Cg)
    b_p = jnp.tile(b.astype(jnp.float32), G)[None, :]
    if Cp != Cg:                                 # lastconv (Cout=20): pad lanes
        w_p = jnp.pad(w_p, ((0, 0), (0, Cp - Cg)))
        b_p = jnp.pad(b_p, ((0, 0), (0, Cp - Cg)))

    in_specs = [
        pl.BlockSpec((TILE_M, Kg), lambda i: (i, 0)),   # streamed A tiles
        pl.BlockSpec((Kg, Cp), lambda i: (0, 0)),       # resident packed weights
        pl.BlockSpec((1, Cp), lambda i: (0, 0)),        # resident bias
    ]
    operands = [lhs, w_p, b_p]
    if apply_prelu:
        al_p = jnp.tile(alpha.astype(jnp.float32), G)[None, :]
        if Cp != Cg:
            al_p = jnp.pad(al_p, ((0, 0), (0, Cp - Cg)))
        in_specs.append(pl.BlockSpec((1, Cp), lambda i: (0, 0)))
        operands.append(al_p)
        kernel = _matmul_bias_prelu_kernel
    else:
        kernel = _matmul_bias_kernel             # no alpha operand / DMA at all

    cost = pl.CostEstimate(
        flops=2 * Rp * Kg * Cp,
        transcendentals=0,
        bytes_accessed=Rp * Kg * 2 + Kg * Cp * 2 + Rp * Cp * out_itemsize)

    out = pl.pallas_call(
        kernel,
        out_shape=jax.ShapeDtypeStruct((Rp, Cp), out_dtype),
        grid=(grid_m,),
        in_specs=in_specs,
        out_specs=pl.BlockSpec((TILE_M, Cp), lambda i: (i, 0)),
        compiler_params=pltpu.CompilerParams(
            dimension_semantics=("parallel",)),
        cost_estimate=cost,
    )(*operands)

    res = out if Cp == Cg else out[:, :Cg]
    res = res.reshape(Mpad, Cout)
    return res if Mpad == M else res[:M]


# ----------------------------------------------------------------------------
# Glue: im2col, conv / conv-transpose wrappers, bilinear resize
# ----------------------------------------------------------------------------
def _im2col(x, k, stride, pad):
    """x: (N,H,W,C) -> ((N*Ho*Wo, k*k*C), N, Ho, Wo), patch order [kh,kw,cin]."""
    N, H, W, C = x.shape
    xp = jnp.pad(x, ((0, 0), (pad, pad), (pad, pad), (0, 0)))
    Ho = (H + 2 * pad - k) // stride + 1
    Wo = (W + 2 * pad - k) // stride + 1
    cols = []
    for kh in range(k):
        for kw in range(k):
            cols.append(
                xp[:, kh:kh + stride * Ho:stride, kw:kw + stride * Wo:stride, :])
    cols = jnp.concatenate(cols, axis=-1)
    return cols.reshape(N * Ho * Wo, k * k * C), N, Ho, Wo


def conv2d_prelu(x, w, b, alpha, stride=1, pad=1):
    """x: (N,H,W,Cin), w: (kH,kW,Cin,Cout). Conv2d(bias=True) + PReLU(Cout).

    Returns bf16 (intentional precision reduction; next layer consumes bf16)."""
    kH, kW, Cin, Cout = w.shape
    # Cast to bf16 *before* im2col so the materialized patch matrix (dominant
    # HBM byte stream) is half-width.
    cols, N, Ho, Wo = _im2col(x.astype(jnp.bfloat16), kH, stride, pad)
    out = fused_matmul_bias_act(cols, w.reshape(kH * kW * Cin, Cout), b, alpha)
    return out.reshape(N, Ho, Wo, Cout)


def conv_transpose2d_4s2p1(x, wt, b):
    """PyTorch ConvTranspose2d(Cin, Cout, 4, 2, 1); wt: (Cin, Cout, 4, 4).

    Sub-pixel decomposition: output phase (rh, rw) at position (2m+rh, 2p+rw)
    only needs a 2x2 neighborhood of the input; all four phases share one 3x3
    window of the zero-padded input, so the whole op is a single dense matmul
    with a (9*Cin, 4*Cout) structured weight, then a pixel interleave (done on
    the bf16, Cout-channel result).
    """
    N, H, W, Cin = x.shape
    Cout = wt.shape[1]
    wt = wt.astype(jnp.float32)

    # Kernel taps per phase: even rows (rh=0) use kh = (3, 1); odd rows use
    # kh = (2, 0) -- derived from oh + 1 = 2*ih + kh.  Same for columns.
    KTAP = ((3, 1), (2, 0))
    w_big = jnp.zeros((3, 3, Cin, 4 * Cout), jnp.float32)
    for rh in range(2):
        for rw in range(2):
            g = rh * 2 + rw
            for dh in range(2):
                for dw in range(2):
                    w_big = w_big.at[rh + dh, rw + dw, :, g * Cout:(g + 1) * Cout].set(
                        wt[:, :, KTAP[rh][dh], KTAP[rw][dw]])
    b_big = jnp.tile(b.astype(jnp.float32), 4)

    xp = jnp.pad(x.astype(jnp.bfloat16), ((0, 0), (1, 1), (1, 1), (0, 0)))
    cols, _, Ho, Wo = _im2col(xp, 3, 1, 0)            # Ho == H, Wo == W
    out = fused_matmul_bias_act(cols, w_big.reshape(9 * Cin, 4 * Cout), b_big,
                                alpha=None)           # no activation, no alpha DMA
    out = out.reshape(N, H, W, 2, 2, Cout)
    out = jnp.transpose(out, (0, 1, 3, 2, 4, 5)).reshape(N, 2 * H, 2 * W, Cout)
    return out


def _resize_axis_params(out_size, in_size):
    c = (jnp.arange(out_size, dtype=jnp.float32) + 0.5) * (in_size / out_size) - 0.5
    i0 = jnp.floor(c)
    frac = c - i0
    i0 = i0.astype(jnp.int32)
    lo = jnp.clip(i0, 0, in_size - 1)
    hi = jnp.clip(i0 + 1, 0, in_size - 1)
    return lo, hi, frac


def bilinear_resize_nhwc(x, out_h, out_w):
    """F.interpolate(mode='bilinear', align_corners=False) equivalent (NHWC)."""
    fh_lo, fh_hi, fh = _resize_axis_params(out_h, x.shape[1])
    fw_lo, fw_hi, fw = _resize_axis_params(out_w, x.shape[2])
    xh = (x[:, fh_lo] * (1.0 - fh)[None, :, None, None]
          + x[:, fh_hi] * fh[None, :, None, None])
    return (xh[:, :, fw_lo] * (1.0 - fw)[None, None, :, None]
            + xh[:, :, fw_hi] * fw[None, None, :, None])


# ----------------------------------------------------------------------------
# Parameters (deterministic synthetic init; shapes per MVFB.__init__)
# ----------------------------------------------------------------------------
def _init_conv(key, cin, cout, k):
    k1, k2 = jax.random.split(key)
    return {
        "w": jax.random.normal(k1, (k, k, cin, cout), jnp.float32) * 0.1,
        "b": jax.random.normal(k2, (cout,), jnp.float32) * 0.1,
        "alpha": jnp.full((cout,), 0.25, jnp.float32),   # PReLU default init
    }


def init_mvfb_params(key, in_planes, num_feature):
    nf = num_feature
    keys = jax.random.split(key, 16)
    return {
        "conv0": [_init_conv(keys[0], in_planes, nf // 2, 3),
                  _init_conv(keys[1], nf // 2, nf, 3)],
        "convblock": [_init_conv(keys[2], nf, nf, 3),
                      _init_conv(keys[3], nf, nf, 3),
                      _init_conv(keys[4], nf, nf, 3)],
        "conv_sq": [_init_conv(keys[5], nf, nf // 4, 3)],
        "conv1": [_init_conv(keys[6], in_planes, 8, 3)],
        "convblock1": [_init_conv(keys[7], 8, 8, 3)],
        "lastconv": {
            # ConvTranspose2d weight layout: (Cin, Cout, kH, kW)
            "w": jax.random.normal(keys[8], (nf // 4 + 8, 5, 4, 4), jnp.float32) * 0.1,
            "b": jax.random.normal(keys[9], (5,), jnp.float32) * 0.1,
        },
    }


# ----------------------------------------------------------------------------
# MVFB forward
# ----------------------------------------------------------------------------
def mvfb_forward(params, x_nchw, flow_nchw, scale=1):
    x = jnp.transpose(x_nchw, (0, 2, 3, 1))       # NCHW -> NHWC
    flow = jnp.transpose(flow_nchw, (0, 2, 3, 1))
    x0, flow0 = x, flow

    if scale != 1:
        # TODO(synk): PyTorch recompute_scale_factor rounding only differs for
        # non-integer H/scale ratios.
        nh = int(x.shape[1] / scale)
        nw = int(x.shape[2] / scale)
        x = bilinear_resize_nhwc(x, nh, nw)
        flow = bilinear_resize_nhwc(flow, nh, nw) * (1.0 / scale)

    xin = jnp.concatenate([x, flow], axis=-1)

    def run_seq(h, layer_params, strides):
        for p, s in zip(layer_params, strides):
            h = conv2d_prelu(h, p["w"], p["b"], p["alpha"], stride=s, pad=1)
        return h

    # TODO(synk): convblock / convblock1 chains are separate pallas_calls; a
    # single VMEM-resident fused call needs in-kernel halo windowing.
    x1 = run_seq(xin, params["conv0"], [2, 2])
    xb = run_seq(x1, params["convblock"], [1, 1, 1])
    csq = params["conv_sq"][0]
    x2 = conv2d_prelu(xb + x1, csq["w"], csq["b"], csq["alpha"], stride=1, pad=1)

    x3 = run_seq(jnp.concatenate([x0, flow0], axis=-1), params["conv1"], [2])
    x4 = run_seq(x3, params["convblock1"], [1])

    if x2.shape[1] != x4.shape[1]:
        x2 = bilinear_resize_nhwc(x2, x4.shape[1], x4.shape[2])
    else:
        x2 = bilinear_resize_nhwc(x2, int(x2.shape[1] * scale * 2),
                                  int(x2.shape[2] * scale * 2))

    tmp = conv_transpose2d_4s2p1(jnp.concatenate([x2, x4], axis=-1),
                                 params["lastconv"]["w"], params["lastconv"]["b"])
    tmp = jnp.transpose(tmp, (0, 3, 1, 2)).astype(jnp.float32)  # NHWC -> NCHW
    return tmp[:, :4], tmp[:, 4:5]


# ----------------------------------------------------------------------------
# Plain-XLA references for building-block self-checks
# ----------------------------------------------------------------------------
def _conv2d_prelu_ref(x, w, b, alpha, stride, pad):
    y = lax.conv_general_dilated(
        x, w, window_strides=(stride, stride),
        padding=[(pad, pad), (pad, pad)],
        dimension_numbers=("NHWC", "HWIO", "NHWC"))
    y = y + b[None, None, None, :]
    return jnp.where(y >= 0.0, y, y * alpha[None, None, None, :])


def _conv_transpose_ref(x, wt, b):
    # ConvTranspose2d(k=4, s=2, p=1) == conv(lhs_dilation=2, pad=k-1-p=2,
    # spatially flipped kernel).
    w = jnp.transpose(jnp.flip(wt, axis=(2, 3)), (2, 3, 0, 1))   # -> HWIO
    y = lax.conv_general_dilated(
        x, w, window_strides=(1, 1), padding=[(2, 2), (2, 2)],
        lhs_dilation=(2, 2), dimension_numbers=("NHWC", "HWIO", "NHWC"))
    return y + b[None, None, None, :]


def _check_close(got, ref, tol=6e-2):
    err = float(jnp.max(jnp.abs(got.astype(jnp.float32) - ref)))
    scale = float(jnp.max(jnp.abs(ref))) + 1e-6
    assert err <= tol * scale, f"mismatch: max|diff|={err:.4f} vs max|ref|={scale:.4f}"


# ----------------------------------------------------------------------------
if __name__ == "__main__":
    key = jax.random.PRNGKey(0)
    kp, kx, kf, kc1, kc2, kc3 = jax.random.split(key, 6)

    # Building-block self-checks (bf16 matmul + bf16 output -> loose tolerance).
    xs = jax.random.normal(kc1, (1, 6, 6, 8), jnp.float32)
    ws = jax.random.normal(kc2, (3, 3, 8, 16), jnp.float32) * 0.1
    bs = jax.random.normal(kc3, (16,), jnp.float32) * 0.1
    als = jnp.full((16,), 0.25, jnp.float32)
    _check_close(conv2d_prelu(xs, ws, bs, als, stride=2, pad=1),
                 _conv2d_prelu_ref(xs, ws, bs, als, stride=2, pad=1))
    _check_close(conv2d_prelu(xs, ws, bs, als, stride=1, pad=1),
                 _conv2d_prelu_ref(xs, ws, bs, als, stride=1, pad=1))

    xt = jax.random.normal(kc1, (1, 5, 5, 12), jnp.float32)
    wt = jax.random.normal(kc2, (12, 5, 4, 4), jnp.float32) * 0.1
    bt = jax.random.normal(kc3, (5,), jnp.float32) * 0.1
    _check_close(conv_transpose2d_4s2p1(xt, wt, bt), _conv_transpose_ref(xt, wt, bt))

    # MVFB forward.
    in_planes = 8          # = channels(x) + channels(flow) = 4 + 4
    num_feature = 16
    params = init_mvfb_params(kp, in_planes, num_feature)

    x = jax.random.normal(kx, (2, 4, 16, 16), jnp.float32)      # NCHW
    flow = jax.random.normal(kf, (2, 4, 16, 16), jnp.float32)   # NCHW (4ch flow)

    fwd = jax.jit(mvfb_forward, static_argnames=("scale",))
    flow_out, mask_out = fwd(params, x, flow, scale=1)
    jax.block_until_ready((flow_out, mask_out))

    assert flow_out.shape == (2, 4, 16, 16), flow_out.shape
    assert mask_out.shape == (2, 1, 16, 16), mask_out.shape
    assert bool(jnp.all(jnp.isfinite(flow_out))) and bool(jnp.all(jnp.isfinite(mask_out)))
    print("KERNEL_OK")
</pallas_src>

<mosaic_0001>
module attributes {stable_mosaic.version = 11 : i64} {
  func.func @_matmul_bias_prelu_kernel(%arg0: i32, %arg1: memref<16x576xbf16, #tpu.memory_space<vmem>>, %arg2: memref<576x128xbf16, #tpu.memory_space<vmem>>, %arg3: memref<1x128xf32, #tpu.memory_space<vmem>>, %arg4: memref<1x128xf32, #tpu.memory_space<vmem>>, %arg5: memref<16x128xbf16, #tpu.memory_space<vmem>>) attributes {dimension_semantics = [#tpu.dimension_semantics<parallel>], iteration_bounds = array<i64: 1>, scalar_prefetch = 0 : i64, scratch_operands = 0 : i64, tpu.core_type = #tpu.core_type<tc>, window_params = [{transform_indices = @transform_0, window_bounds = array<i64: 16, 576>}, {pipeline_mode = #tpu.pipeline_mode<synchronous>, transform_indices = @transform_1, window_bounds = array<i64: 576, 128>}, {pipeline_mode = #tpu.pipeline_mode<synchronous>, transform_indices = @transform_2, window_bounds = array<i64: 1, 128>}, {pipeline_mode = #tpu.pipeline_mode<synchronous>, transform_indices = @transform_3, window_bounds = array<i64: 1, 128>}, {transform_indices = @transform_4, window_bounds = array<i64: 16, 128>}]} {
    %c0 = arith.constant 0 : index
    %c0_0 = arith.constant 0 : index
    %0 = vector.load %arg1[%c0, %c0_0] : memref<16x576xbf16, #tpu.memory_space<vmem>>, vector<16x576xbf16>
    %c0_1 = arith.constant 0 : index
    %c0_2 = arith.constant 0 : index
    %1 = vector.load %arg2[%c0_1, %c0_2] : memref<576x128xbf16, #tpu.memory_space<vmem>>, vector<576x128xbf16>
    %cst = arith.constant dense<0.000000e+00> : vector<16x128xf32>
    %2 = tpu.matmul %0, %1, %cst {dimension_numbers = #tpu.dot_dimension_numbers<[1], [0], [0], [1], [0, 0, 1, 1], [], []>} : vector<16x576xbf16>, vector<576x128xbf16>, vector<16x128xf32> -> vector<16x128xf32>
    %c0_3 = arith.constant 0 : index
    %c0_4 = arith.constant 0 : index
    %3 = vector.load %arg3[%c0_3, %c0_4] : memref<1x128xf32, #tpu.memory_space<vmem>>, vector<1x128xf32>
    %4 = vector.broadcast %3 : vector<1x128xf32> to vector<16x128xf32>
    %5 = arith.addf %2, %4 : vector<16x128xf32>
    %c0_5 = arith.constant 0 : index
    %c0_6 = arith.constant 0 : index
    %6 = vector.load %arg4[%c0_5, %c0_6] : memref<1x128xf32, #tpu.memory_space<vmem>>, vector<1x128xf32>
    %cst_7 = arith.constant 0.000000e+00 : f32
    %7 = vector.broadcast %cst_7 : f32 to vector<16x128xf32>
    %8 = arith.cmpf oge, %5, %7 : vector<16x128xf32>
    %9 = vector.broadcast %6 : vector<1x128xf32> to vector<16x128xf32>
    %10 = arith.mulf %5, %9 : vector<16x128xf32>
    %11 = arith.select %8, %5, %10 : vector<16x128xi1>, vector<16x128xf32>
    %12 = arith.truncf %11 : vector<16x128xf32> to vector<16x128xbf16>
    %c0_8 = arith.constant 0 : index
    %c0_9 = arith.constant 0 : index
    %13 = vector.load %arg5[%c0_8, %c0_9] : memref<16x128xbf16, #tpu.memory_space<vmem>>, vector<16x128xbf16>
    tpu.vector_store %arg5[%c0_8, %c0_9], %12 {strides = array<i32>} : memref<16x128xbf16, #tpu.memory_space<vmem>>, vector<16x128xbf16>,
    return
  }
  func.func @transform_0(%arg0: i32) -> (i32, i32) {
    %c0_i32 = arith.constant 0 : i32
    %c0_i32_0 = arith.constant 0 : i32
    return %arg0, %c0_i32 : i32, i32
  }
  func.func @transform_1(%arg0: i32) -> (i32, i32) {
    %c0_i32 = arith.constant 0 : i32
    %c0_i32_0 = arith.constant 0 : i32
    %c0_i32_1 = arith.constant 0 : i32
    return %c0_i32, %c0_i32_0 : i32, i32
  }
  func.func @transform_2(%arg0: i32) -> (i32, i32) {
    %c0_i32 = arith.constant 0 : i32
    %c0_i32_0 = arith.constant 0 : i32
    %c0_i32_1 = arith.constant 0 : i32
    return %c0_i32, %c0_i32_0 : i32, i32
  }
  func.func @transform_3(%arg0: i32) -> (i32, i32) {
    %c0_i32 = arith.constant 0 : i32
    %c0_i32_0 = arith.constant 0 : i32
    %c0_i32_1 = arith.constant 0 : i32
    return %c0_i32, %c0_i32_0 : i32, i32
  }
  func.func @transform_4(%arg0: i32) -> (i32, i32) {
    %c0_i32 = arith.constant 0 : i32
    %c0_i32_0 = arith.constant 0 : i32
    return %arg0, %c0_i32 : i32, i32
  }
}

</mosaic_0001>

<llo_original>
// kernel: tpu_custom_call.1
$region0: #{tpu_custom_call.1}
  #allocation0 [shape = 'u32[]', space=smem, size = 0x4, offset = 0x4, fixed_abs, tag = 'smem constant byte address 0x4 - core index']
  #allocation1 [shape = 'u32[144,128]{1,0:T(1,128)}', space=vmem, size = 0x12000, scoped, tag = 'internal scratch']
  %s0 = inlined_call_operand.hbm [shape: bf16[16,576], index: 0, kind: input, shape index: {}]
  %s1 = inlined_call_operand.hbm [shape: bf16[576,128], index: 1, kind: input, shape index: {}]
  %s2 = inlined_call_operand.vmem [shape: f32[1,128], index: 2, kind: input, shape index: {}]
  %s3 = inlined_call_operand.vmem [shape: f32[1,128], index: 3, kind: input, shape index: {}]
  %s4 = inlined_call_operand.hbm [shape: bf16[16,128], index: 4, kind: output, shape index: {}]
  %s5 = sld [smem:[#allocation0]]
  $region34: #{tpu_custom_call.1} parent=0
    _
  %s7 = ssub.s32 1, %s5
  %s8 = scalar_select 0, %s7, %s5
  $region1: #{tpu_custom_call.1} parent=0
    #allocation2 [shape = 'u8[20480]{0}', space=vmem, size = 0x5000, scoped, tag = 'input window, operand 0, single buffered']
    #allocation3 [shape = 's32[1]{0}', space=sflag, size = 0x4, scoped, tag = 'scoped memory for tpu_custom_call.1']
    #allocation4 [shape = 's32[1]{0}', space=sflag, size = 0x4, scoped, tag = 'scoped memory for tpu_custom_call.1']
    #allocation5 [shape = 'u8[147456]{0}', space=vmem, size = 0x24000, scoped, tag = 'input window, operand 1, single buffered']
    #allocation6 [shape = 's32[1]{0}', space=sflag, size = 0x4, scoped, tag = 'scoped memory for tpu_custom_call.1']
    #allocation7 [shape = 'u8[4096]{0}', space=vmem, size = 0x1000, scoped, tag = 'output window, operand 0, single buffered']
    %9 = vsyncpa [#allocation3], 0
    %10 = vsyncpa [#allocation6], 0
    %11 = vsyncpa [#allocation4], 0
    // Predicated region
    $region2: #{tpu_custom_call.1} parent=1 // pred_check
      _
    $region3: #{tpu_custom_call.1} parent=1 // pred_check_branch
      %13 = sbr.rel (0) target = $region5
    $region4: #{tpu_custom_call.1} parent=1 // pred_region
      %s15 = ssub.s32 640, 640
      %16 = vsyncadd [#allocation3], %s15
      %s17 = sshll.u32 [#allocation2], 4
      %s18 = int_to_ptr.vmem [resolvable:$true] %s17
      %23 = dma.hbm_to_vmem [thread:$0]  %s0, 640, %s18, [#allocation3], 320, 320, 20
    $region5: #{tpu_custom_call.1} parent=1 // pred_fallthru
      _
    // Predicated region
    $region6: #{tpu_custom_call.1} parent=1 // pred_check
      _
    $region7: #{tpu_custom_call.1} parent=1 // pred_check_branch
      %25 = sbr.rel (0) target = $region9
    $region8: #{tpu_custom_call.1} parent=1 // pred_region
      %s27 = ssub.s32 4608, 4608
      %28 = vsyncadd [#allocation6], %s27
      %s29 = sshll.u32 [#allocation5], 4
      %s30 = int_to_ptr.vmem [resolvable:$true] %s29
      %35 = dma.hbm_to_vmem [thread:$0]  %s1, 4608, %s30, [#allocation6], 64, 64, 4
    $region9: #{tpu_custom_call.1} parent=1 // pred_fallthru
      _
    // Predicated region
    $region10: #{tpu_custom_call.1} parent=1 // pred_check
      _
    $region11: #{tpu_custom_call.1} parent=1 // pred_check_branch
      %37 = sbr.rel (0) target = $region13
    $region12: #{tpu_custom_call.1} parent=1 // pred_region
      _
    $region13: #{tpu_custom_call.1} parent=1 // pred_fallthru
      _
    // Predicated region
    $region14: #{tpu_custom_call.1} parent=1 // pred_check
      _
    $region15: #{tpu_custom_call.1} parent=1 // pred_check_branch
      %39 = sbr.rel (0) target = $region17
    $region16: #{tpu_custom_call.1} parent=1 // pred_region
      _
    $region17: #{tpu_custom_call.1} parent=1 // pred_fallthru
      _
    // Predicated region
    $region18: #{tpu_custom_call.1} parent=1 // pred_check
      _
    $region19: #{tpu_custom_call.1} parent=1 // pred_check_branch
      %41 = sbr.rel (0) target = $region21
    $region20: #{tpu_custom_call.1} parent=1 // pred_region
      %42 = dma.done [#allocation3], 640
    $region21: #{tpu_custom_call.1} parent=1 // pred_fallthru
      _
    // Predicated region
    $region22: #{tpu_custom_call.1} parent=1 // pred_check
      _
    $region23: #{tpu_custom_call.1} parent=1 // pred_check_branch
      %44 = sbr.rel (0) target = $region25
    $region24: #{tpu_custom_call.1} parent=1 // pred_region
      %45 = dma.done [#allocation6], 4608
    $region25: #{tpu_custom_call.1} parent=1 // pred_fallthru
      _
    %v47 = vld [vmem:[#allocation2] sm:$0xff]
    %v48 = vld [vmem:[#allocation2 + $0x8] sm:$0xff]
    %v49 = vld [vmem:[#allocation2 + $0x10] sm:$0xf]
    %v50 = vld [vmem:[#allocation2 + $0x14] sm:$0xff]
    %v51 = vld [vmem:[#allocation2 + $0x1c] sm:$0xff]
    %v52 = vld [vmem:[#allocation2 + $0x24] sm:$0xf]
    %v53 = vld [vmem:[#allocation5] sm:$0xf]
    %v54 = vld [vmem:[#allocation5 + $0x4] sm:$0xf]
    %v55 = vld [vmem:[#allocation5 + $0x8] sm:$0xf]
    %v56 = vld [vmem:[#allocation5 + $0xc] sm:$0xf]
    %v57 = vld [vmem:[#allocation5 + $0x10] sm:$0xf]
    %v58 = vld [vmem:[#allocation5 + $0x14] sm:$0xf]
    %v59 = vld [vmem:[#allocation5 + $0x18] sm:$0xf]
    %v60 = vld [vmem:[#allocation5 + $0x1c] sm:$0xf]
    %v61 = vld [vmem:[#allocation5 + $0x20] sm:$0xf]
    %v62 = vld [vmem:[#allocation5 + $0x24] sm:$0xf]
    %v63 = vld [vmem:[#allocation5 + $0x28] sm:$0xf]
    %v64 = vld [vmem:[#allocation5 + $0x2c] sm:$0xf]
    %v65 = vld [vmem:[#allocation5 + $0x30] sm:$0xf]
    %v66 = vld [vmem:[#allocation5 + $0x34] sm:$0xf]
    %v67 = vld [vmem:[#allocation5 + $0x38] sm:$0xf]
    %v68 = vld [vmem:[#allocation5 + $0x3c] sm:$0xf]
    %v69 = vld [vmem:[#allocation5 + $0x40] sm:$0xf]
    %v70 = vld [vmem:[#allocation5 + $0x44] sm:$0xf]
    %v71 = vld [vmem:[#allocation5 + $0x48] sm:$0xf]
    %v72 = vld [vmem:[#allocation5 + $0x4c] sm:$0xf]
    %v73 = vld [vmem:[#allocation5 + $0x50] sm:$0xf]
    %v74 = vld [vmem:[#allocation5 + $0x54] sm:$0xf]
    %v75 = vld [vmem:[#allocation5 + $0x58] sm:$0xf]
    %v76 = vld [vmem:[#allocation5 + $0x5c] sm:$0xf]
    %v77 = vld [vmem:[#allocation5 + $0x60] sm:$0xf]
    %v78 = vld [vmem:[#allocation5 + $0x64] sm:$0xf]
    %v79 = vld [vmem:[#allocation5 + $0x68] sm:$0xf]
    %v80 = vld [vmem:[#allocation5 + $0x6c] sm:$0xf]
    %v81 = vld [vmem:[#allocation5 + $0x70] sm:$0xf]
    %v82 = vld [vmem:[#allocation5 + $0x74] sm:$0xf]
    %v83 = vld [vmem:[#allocation5 + $0x78] sm:$0xf]
    %v84 = vld [vmem:[#allocation5 + $0x7c] sm:$0xf]
    %v85 = vld [vmem:[#allocation5 + $0x80] sm:$0xf]
    %v86 = vld [vmem:[#allocation5 + $0x84] sm:$0xf]
    %v87 = vld [vmem:[#allocation5 + $0x88] sm:$0xf]
    %v88 = vld [vmem:[#allocation5 + $0x8c] sm:$0xf]
    %v89 = vld [vmem:[#allocation5 + $0x90] sm:$0xf]
    %v90 = vld [vmem:[#allocation5 + $0x94] sm:$0xf]
    %v91 = vld [vmem:[#allocation5 + $0x98] sm:$0xf]
    %v92 = vld [vmem:[#allocation5 + $0x9c] sm:$0xf]
    %v93 = vld [vmem:[#allocation5 + $0xa0] sm:$0xf]
    %v94 = vld [vmem:[#allocation5 + $0xa4] sm:$0xf]
    %v95 = vld [vmem:[#allocation5 + $0xa8] sm:$0xf]
    %v96 = vld [vmem:[#allocation5 + $0xac] sm:$0xf]
    %v97 = vld [vmem:[#allocation5 + $0xb0] sm:$0xf]
    %v98 = vld [vmem:[#allocation5 + $0xb4] sm:$0xf]
    %v99 = vld [vmem:[#allocation5 + $0xb8] sm:$0xf]
    %v100 = vld [vmem:[#allocation5 + $0xbc] sm:$0xf]
    %v101 = vld [vmem:[#allocation5 + $0xc0] sm:$0xf]
    %v102 = vld [vmem:[#allocation5 + $0xc4] sm:$0xf]
    %v103 = vld [vmem:[#allocation5 + $0xc8] sm:$0xf]
    %v104 = vld [vmem:[#allocation5 + $0xcc] sm:$0xf]
    %v105 = vld [vmem:[#allocation5 + $0xd0] sm:$0xf]
    %v106 = vld [vmem:[#allocation5 + $0xd4] sm:$0xf]
    %v107 = vld [vmem:[#allocation5 + $0xd8] sm:$0xf]
    %v108 = vld [vmem:[#allocation5 + $0xdc] sm:$0xf]
    %v109 = vld [vmem:[#allocation5 + $0xe0] sm:$0xf]
    %v110 = vld [vmem:[#allocation5 + $0xe4] sm:$0xf]
    %v111 = vld [vmem:[#allocation5 + $0xe8] sm:$0xf]
    %v112 = vld [vmem:[#allocation5 + $0xec] sm:$0xf]
    %v113 = vld [vmem:[#allocation5 + $0xf0] sm:$0xf]
    %v114 = vld [vmem:[#allocation5 + $0xf4] sm:$0xf]
    %v115 = vld [vmem:[#allocation5 + $0xf8] sm:$0xf]
    %v116 = vld [vmem:[#allocation5 + $0xfc] sm:$0xf]
    %v117 = vld [vmem:[#allocation5 + $0x100] sm:$0xf]
    %v118 = vld [vmem:[#allocation5 + $0x104] sm:$0xf]
    %v119 = vld [vmem:[#allocation5 + $0x108] sm:$0xf]
    %v120 = vld [vmem:[#allocation5 + $0x10c] sm:$0xf]
    %v121 = vld [vmem:[#allocation5 + $0x110] sm:$0xf]
    %v122 = vld [vmem:[#allocation5 + $0x114] sm:$0xf]
    %v123 = vld [vmem:[#allocation5 + $0x118] sm:$0xf]
    %v124 = vld [vmem:[#allocation5 + $0x11c] sm:$0xf]
    %v125 = vld [vmem:[%s2] sm:$0x1]
    %v127 = vlaneseq
    %v128 = vshrl.u32 %v127, 7
    %v129 = vsub.s32 0, %v128
    %v130 = vrot.slane %v125, %v129
    %v138 = vunpack.c.l.b16 %v47
    %v139 = vunpack.c.h.b16 %v47
    %v140 = vunpack.c.l.b16 %v48
    %v141 = vunpack.c.h.b16 %v48
    %v142 = vunpack.c.l.b16 %v49
    %v143 = vunpack.c.l.b16 %v50
    %v144 = vunpack.c.h.b16 %v50
    %v145 = vunpack.c.l.b16 %v51
    %v146 = vunpack.c.h.b16 %v51
    %v147 = vunpack.c.l.b16 %v52
    %v148 = vpack.c.b16 %v143, %v138
    %v149 = vpack.c.b16 %v144, %v139
    %v150 = vpack.c.b16 %v145, %v140
    %v151 = vpack.c.b16 %v146, %v141
    %v152 = vpack.c.b16 %v147, %v142
    %v229 = vunpack.c.l.b16 %v53
    %v230 = vunpack.c.l.b16 %v54
    %v231 = vunpack.c.l.b16 %v55
    %v232 = vunpack.c.l.b16 %v56
    %v233 = vunpack.c.l.b16 %v57
    %v234 = vunpack.c.l.b16 %v58
    %v235 = vunpack.c.l.b16 %v59
    %v236 = vunpack.c.l.b16 %v60
    %v237 = vunpack.c.l.b16 %v61
    %v238 = vunpack.c.l.b16 %v62
    %v239 = vunpack.c.l.b16 %v63
    %v240 = vunpack.c.l.b16 %v64
    %v241 = vunpack.c.l.b16 %v65
    %v242 = vunpack.c.l.b16 %v66
    %v243 = vunpack.c.l.b16 %v67
    %v244 = vunpack.c.l.b16 %v68
    %v245 = vunpack.c.l.b16 %v69
    %v246 = vunpack.c.l.b16 %v70
    %v247 = vunpack.c.l.b16 %v71
    %v248 = vunpack.c.l.b16 %v72
    %v249 = vunpack.c.l.b16 %v73
    %v250 = vunpack.c.l.b16 %v74
    %v251 = vunpack.c.l.b16 %v75
    %v252 = vunpack.c.l.b16 %v76
    %v253 = vunpack.c.l.b16 %v77
    %v254 = vunpack.c.l.b16 %v78
    %v255 = vunpack.c.l.b16 %v79
    %v256 = vunpack.c.l.b16 %v80
    %v257 = vunpack.c.l.b16 %v81
    %v258 = vunpack.c.l.b16 %v82
    %v259 = vunpack.c.l.b16 %v83
    %v260 = vunpack.c.l.b16 %v84
    %v261 = vunpack.c.l.b16 %v85
    %v262 = vunpack.c.l.b16 %v86
    %v263 = vunpack.c.l.b16 %v87
    %v264 = vunpack.c.l.b16 %v88
    %v265 = vunpack.c.l.b16 %v89
    %v266 = vunpack.c.l.b16 %v90
    %v267 = vunpack.c.l.b16 %v91
    %v268 = vunpack.c.l.b16 %v92
    %v269 = vunpack.c.l.b16 %v93
    %v270 = vunpack.c.l.b16 %v94
    %v271 = vunpack.c.l.b16 %v95
    %v272 = vunpack.c.l.b16 %v96
    %v273 = vunpack.c.l.b16 %v97
    %v274 = vunpack.c.l.b16 %v98
    %v275 = vunpack.c.l.b16 %v99
    %v276 = vunpack.c.l.b16 %v100
    %v277 = vunpack.c.l.b16 %v101
    %v278 = vunpack.c.l.b16 %v102
    %v279 = vunpack.c.l.b16 %v103
    %v280 = vunpack.c.l.b16 %v104
    %v281 = vunpack.c.l.b16 %v105
    %v282 = vunpack.c.l.b16 %v106
    %v283 = vunpack.c.l.b16 %v107
    %v284 = vunpack.c.l.b16 %v108
    %v285 = vunpack.c.l.b16 %v109
    %v286 = vunpack.c.l.b16 %v110
    %v287 = vunpack.c.l.b16 %v111
    %v288 = vunpack.c.l.b16 %v112
    %v289 = vunpack.c.l.b16 %v113
    %v290 = vunpack.c.l.b16 %v114
    %v291 = vunpack.c.l.b16 %v115
    %v292 = vunpack.c.l.b16 %v116
    %v293 = vunpack.c.l.b16 %v117
    %v294 = vunpack.c.l.b16 %v118
    %v295 = vunpack.c.l.b16 %v119
    %v296 = vunpack.c.l.b16 %v120
    %v297 = vunpack.c.l.b16 %v121
    %v298 = vunpack.c.l.b16 %v122
    %v299 = vunpack.c.l.b16 %v123
    %v300 = vunpack.c.l.b16 %v124
    %v301 = vpack.c.b16 %v230, %v229
    %v302 = vpack.c.b16 %v232, %v231
    %v303 = vpack.c.b16 %v234, %v233
    %v304 = vpack.c.b16 %v236, %v235
    %v305 = vpack.c.b16 %v238, %v237
    %v306 = vpack.c.b16 %v240, %v239
    %v307 = vpack.c.b16 %v242, %v241
    %v308 = vpack.c.b16 %v244, %v243
    %v309 = vpack.c.b16 %v246, %v245
    %v310 = vpack.c.b16 %v248, %v247
    %v311 = vpack.c.b16 %v250, %v249
    %v312 = vpack.c.b16 %v252, %v251
    %v313 = vpack.c.b16 %v254, %v253
    %v314 = vpack.c.b16 %v256, %v255
    %v315 = vpack.c.b16 %v258, %v257
    %v316 = vpack.c.b16 %v260, %v259
    %v317 = vpack.c.b16 %v262, %v261
    %v318 = vpack.c.b16 %v264, %v263
    %v319 = vpack.c.b16 %v266, %v265
    %v320 = vpack.c.b16 %v268, %v267
    %v321 = vpack.c.b16 %v270, %v269
    %v322 = vpack.c.b16 %v272, %v271
    %v323 = vpack.c.b16 %v274, %v273
    %v324 = vpack.c.b16 %v276, %v275
    %v325 = vpack.c.b16 %v278, %v277
    %v326 = vpack.c.b16 %v280, %v279
    %v327 = vpack.c.b16 %v282, %v281
    %v328 = vpack.c.b16 %v284, %v283
    %v329 = vpack.c.b16 %v286, %v285
    %v330 = vpack.c.b16 %v288, %v287
    %v331 = vpack.c.b16 %v290, %v289
    %v332 = vpack.c.b16 %v292, %v291
    %v333 = vpack.c.b16 %v294, %v293
    %v334 = vpack.c.b16 %v296, %v295
    %v335 = vpack.c.b16 %v298, %v297
    %v336 = vpack.c.b16 %v300, %v299
    %vm373 = vcmask 523264
    %v375 = vsel %vm373, %v152, 0
    %377 = vmatprep.subr.bf16.mxu0 0
    %378 = vmatpush1.bf16.msra.mxu0 %v308
    %379 = vmatprep.subr.bf16.mxu0 0
    %380 = vmatpush1.bf16.msra.mxu0 %v307
    %381 = vmatprep.subr.bf16.mxu0 0
    %382 = vmatpush1.bf16.msra.mxu0 %v306
    %383 = vmatprep.subr.bf16.mxu0 0
    %384 = vmatpush1.bf16.msra.mxu0 %v305
    %385 = vmatprep.subr.bf16.mxu0 0
    %386 = vmatpush1.bf16.msra.mxu0 %v304
    %387 = vmatprep.subr.bf16.mxu0 0
    %388 = vmatpush1.bf16.msra.mxu0 %v303
    %389 = vmatprep.subr.bf16.mxu0 0
    %390 = vmatpush1.bf16.msra.mxu0 %v302
    %391 = vmatprep.subr.bf16.mxu0 0
    %392 = vmatpush1.bf16.msra.mxu0 %v301
    %393 = vmatprep.subr.bf16.mxu0 0
    %394 = vmatpush2.bf16.msra.mxu0 %v316
    %395 = vmatprep.subr.bf16.mxu0 0
    %396 = vmatpush2.bf16.msra.mxu0 %v315
    %397 = vmatprep.subr.bf16.mxu0 0
    %398 = vmatpush2.bf16.msra.mxu0 %v314
    %399 = vmatprep.subr.bf16.mxu0 0
    %400 = vmatpush2.bf16.msra.mxu0 %v313
    %401 = vmatprep.subr.bf16.mxu0 0
    %402 = vmatpush2.bf16.msra.mxu0 %v312
    %403 = vmatprep.subr.bf16.mxu0 0
    %404 = vmatpush2.bf16.msra.mxu0 %v311
    %405 = vmatprep.subr.bf16.mxu0 0
    %406 = vmatpush2.bf16.msra.mxu0 %v310
    %407 = vmatprep.subr.bf16.mxu0 0
    %408 = vmatpush2.bf16.msra.mxu0 %v309
    %409 = vmatprep.mubr.bf16.mxu0 %v149
    %410 = vmatmul.mubr.bf16.gmra.mxu0 %v148
    %v411 = vpop.f32.mrf.mxu0
    %v412 = vadd.f32 %v130, %v411
    %v413 = vpop.f32.mrf.mxu0
    %v414 = vpop.f32.mrf.mxu0
    %v415 = vadd.f32 %v130, %v414
    %v416 = vpop.f32.mrf.mxu0
    %417 = vdwg.mxu0
    %418 = vmatprep.subr.bf16.mxu0 0
    %419 = vmatpush1.bf16.msra.mxu0 %v324
    %420 = vmatprep.subr.bf16.mxu0 0
    %421 = vmatpush1.bf16.msra.mxu0 %v323
    %422 = vmatprep.subr.bf16.mxu0 0
    %423 = vmatpush1.bf16.msra.mxu0 %v322
    %424 = vmatprep.subr.bf16.mxu0 0
    %425 = vmatpush1.bf16.msra.mxu0 %v321
    %426 = vmatprep.subr.bf16.mxu0 0
    %427 = vmatpush1.bf16.msra.mxu0 %v320
    %428 = vmatprep.subr.bf16.mxu0 0
    %429 = vmatpush1.bf16.msra.mxu0 %v319
    %430 = vmatprep.subr.bf16.mxu0 0
    %431 = vmatpush1.bf16.msra.mxu0 %v318
    %432 = vmatprep.subr.bf16.mxu0 0
    %433 = vmatpush1.bf16.msra.mxu0 %v317
    %434 = vmatprep.subr.bf16.mxu0 0
    %435 = vmatpush2.bf16.msra.mxu0 %v332
    %436 = vmatprep.subr.bf16.mxu0 0
    %437 = vmatpush2.bf16.msra.mxu0 %v331
    %438 = vmatprep.subr.bf16.mxu0 0
    %439 = vmatpush2.bf16.msra.mxu0 %v330
    %440 = vmatprep.subr.bf16.mxu0 0
    %441 = vmatpush2.bf16.msra.mxu0 %v329
    %442 = vmatprep.subr.bf16.mxu0 0
    %443 = vmatpush2.bf16.msra.mxu0 %v328
    %444 = vmatprep.subr.bf16.mxu0 0
    %445 = vmatpush2.bf16.msra.mxu0 %v327
    %446 = vmatprep.subr.bf16.mxu0 0
    %447 = vmatpush2.bf16.msra.mxu0 %v326
    %448 = vmatprep.subr.bf16.mxu0 0
    %449 = vmatpush2.bf16.msra.mxu0 %v325
    %450 = vmatprep.mubr.bf16.mxu0 %v151
    %451 = vmatmul.mubr.bf16.gmra.mxu0 %v150
    %v452 = vpop.f32.mrf.mxu0
    %v453 = vadd.f32 %v412, %v452
    %v454 = vpop.f32.mrf.mxu0
    %v455 = vpop.f32.mrf.mxu0
    %v456 = vadd.f32 %v415, %v455
    %v457 = vpop.f32.mrf.mxu0
    %458 = vdwg.mxu0
    %459 = vmatprep.subr.bf16.mxu0 0
    %460 = vmatpush1.bf16.msra.mxu0 0
    %461 = vmatprep.subr.bf16.mxu0 0
    %462 = vmatpush1.bf16.msra.mxu0 0
    %463 = vmatprep.subr.bf16.mxu0 0
    %464 = vmatpush1.bf16.msra.mxu0 0
    %465 = vmatprep.subr.bf16.mxu0 0
    %466 = vmatpush1.bf16.msra.mxu0 0
    %467 = vmatprep.subr.bf16.mxu0 0
    %468 = vmatpush1.bf16.msra.mxu0 %v336
    %469 = vmatprep.subr.bf16.mxu0 0
    %470 = vmatpush1.bf16.msra.mxu0 %v335
    %471 = vmatprep.subr.bf16.mxu0 0
    %472 = vmatpush1.bf16.msra.mxu0 %v334
    %473 = vmatprep.subr.bf16.mxu0 0
    %474 = vmatpush1.bf16.msra.mxu0 %v333
    %475 = vmatprep.subr.bf16.mxu0 0
    %476 = vmatpush2.bf16.msra.mxu0 0
    %477 = vmatprep.subr.bf16.mxu0 0
    %478 = vmatpush2.bf16.msra.mxu0 0
    %479 = vmatprep.subr.bf16.mxu0 0
    %480 = vmatpush2.bf16.msra.mxu0 0
    %481 = vmatprep.subr.bf16.mxu0 0
    %482 = vmatpush2.bf16.msra.mxu0 0
    %483 = vmatprep.subr.bf16.mxu0 0
    %484 = vmatpush2.bf16.msra.mxu0 0
    %485 = vmatprep.subr.bf16.mxu0 0
    %486 = vmatpush2.bf16.msra.mxu0 0
    %487 = vmatprep.subr.bf16.mxu0 0
    %488 = vmatpush2.bf16.msra.mxu0 0
    %489 = vmatprep.subr.bf16.mxu0 0
    %490 = vmatpush2.bf16.msra.mxu0 0
    %491 = vmatprep.mubr.bf16.mxu0 0
    %492 = vmatmul.mubr.bf16.gmra.mxu0 %v375
    %v493 = vpop.f32.mrf.mxu0
    %v494 = vadd.f32 %v453, %v493
    %v495 = vpop.f32.mrf.mxu0
    %v496 = vpop.f32.mrf.mxu0
    %v497 = vadd.f32 %v456, %v496
    %v498 = vpop.f32.mrf.mxu0
    %499 = vdwg.mxu0
    %v500 = vld [vmem:[%s3] sm:$0x1]
    %vm501 = vcmp.ge.f32.partialorder %v494, 0.0
    %vm502 = vcmp.ge.f32.partialorder %v497, 0.0
    %v504 = vlaneseq
    %v505 = vshrl.u32 %v504, 7
    %v506 = vsub.s32 0, %v505
    %v507 = vrot.slane %v500, %v506
    %v509 = vmul.f32 %v494, %v507
    %v510 = vmul.f32 %v497, %v507
    %v511 = vsel %vm501, %v494, %v509
    %v512 = vsel %vm502, %v497, %v510
    %v513 = vpack.c.bf16 %v512, %v511
    %v515 = vunpack.c.l.b16 %v513
    %v516 = vunpack.c.h.b16 %v513
    %v517 = vpack.c.b16 %v515, %v515
    %v518 = vpack.c.b16 %v516, %v516
    %521 = vst [vmem:[#allocation7] sm:$0xf] %v517
    %522 = vst [vmem:[#allocation7 + $0x4] sm:$0xf] %v518
    // Predicated region
    $region26: #{tpu_custom_call.1} parent=1 // pred_check
      _
    $region27: #{tpu_custom_call.1} parent=1 // pred_check_branch
      %524 = sbr.rel (0) target = $region29
    $region28: #{tpu_custom_call.1} parent=1 // pred_region
      %s526 = ssub.s32 128, 128
      %527 = vsyncadd [#allocation4], %s526
      %s528 = sshll.u32 [#allocation7], 4
      %s529 = int_to_ptr.vmem [resolvable:$true] %s528
      %534 = dma.vmem_to_hbm [thread:$0]  %s529, 128, %s4, [#allocation4], 64, 64, 4
    $region29: #{tpu_custom_call.1} parent=1 // pred_fallthru
      _
    // Predicated region
    $region30: #{tpu_custom_call.1} parent=1 // pred_check
      _
    $region31: #{tpu_custom_call.1} parent=1 // pred_check_branch
      %536 = sbr.rel (0) target = $region33
    $region32: #{tpu_custom_call.1} parent=1 // pred_region
      %537 = dma.done [#allocation4], 128
    $region33: #{tpu_custom_call.1} parent=1 // pred_fallthru
      _
    %538 = vsyncpa [#allocation3], 1
    %539 = vsyncpa [#allocation6], 1
    %540 = vsyncpa [#allocation4], 1

</llo_original>
